<compile_context>
chip_gen: v5e
topology: v5e:2x2
jax: 0.10.0
libtpu: 0.0.40
codegen_flags: <defaults>
</compile_context>

<pallas_src>
import jax
import jax.numpy as jnp
from jax.experimental import pallas as pl
from jax.experimental.pallas import tpu as pltpu

H1, H2 = 512, 256


def ae_kernel(x_ref, w1_ref, b1_ref, w2_ref, b2_ref,
              w5_ref, b5_ref, w6_ref, b6_ref,
              recon_ref, z_ref):
    mdt = w1_ref.dtype   # MXU input dtype (bf16 or f32); accumulation is always f32
    adt = b1_ref.dtype   # activation dtype for bias-add + tanh (bf16 on v6e/v7x)

    def layer(h, w_ref, b_ref):
        y = jnp.dot(h.astype(mdt), w_ref[...], preferred_element_type=jnp.float32)
        return jnp.tanh(y.astype(adt) + b_ref[...])

    # encode
    h1 = layer(x_ref[...], w1_ref, b1_ref)
    z = layer(h1, w2_ref, b2_ref)
    # decode
    h3 = layer(z, w5_ref, b5_ref)
    recon = layer(h3, w6_ref, b6_ref)

    recon_ref[...] = recon.astype(recon_ref.dtype)
    z_ref[...] = z.astype(z_ref.dtype)


def _choose_tiling(B, tb_max):
    """Return (tile_rows, n_tiles, padded_rows).

    Tiles are 8-row aligned, at most tb_max rows, and there are >=2 tiles whenever
    the batch allows it (so both v7x TensorCores are busy with the batch axis
    marked "parallel"). Prefer tile counts that divide the (8-rounded) batch
    exactly -- even counts first -- so no jnp.pad copy of x is needed.
    """
    B8 = -(-B // 8) * 8
    if B8 <= 8:
        return 8, 1, 8
    n_min = max(2, -(-B8 // tb_max))        # >=2 grid steps for the 2 v7x TCs
    if B8 >= 8 * 256:                        # big batch: >=2 pipelined steps per TC
        n_min = max(n_min, 4)
    candidates = [n for n in range(n_min, n_min + 9) if n % 2 == 0] + \
                 [n for n in range(n_min, n_min + 9) if n % 2 == 1]
    for n in candidates:
        if n <= B8 // 8 and B8 % n == 0 and (B8 // n) % 8 == 0:
            return B8 // n, n, B8
    tile = (-(-B8 // n_min) + 7) // 8 * 8    # fallback: ragged tail, pad a bit
    n = -(-B8 // tile)
    return tile, n, n * tile


def default_act_dtype():
    """bf16 activations on chips with a bf16 VPU/EUP (v6e, v7x); f32 on v5e/older."""
    try:
        kind = jax.devices()[0].device_kind.lower()
    except Exception:
        return jnp.float32
    if any(t in kind for t in ("v2", "v3", "v4", "v5")):
        return jnp.float32
    return jnp.bfloat16


def prepare_params(params, *, mxu_dtype=jnp.bfloat16, act_dtype=jnp.float32):
    """Cast weights/biases once (hoisted out of ae_forward so it isn't repeated)."""
    w1, b1, w2, b2, w5, b5, w6, b6 = params
    w1, w2, w5, w6 = (w.astype(mxu_dtype) for w in (w1, w2, w5, w6))
    b1, b2, b5, b6 = (b.astype(act_dtype) for b in (b1, b2, b5, b6))
    return (w1, b1, w2, b2, w5, b5, w6, b6)


def ae_forward(x, prepared_params, *, tb=1024, out_dtype=jnp.float32):
    """x: (B, dim). Returns (recon (B, dim), z (B, 256)) in out_dtype."""
    w1, b1, w2, b2, w5, b5, w6, b6 = prepared_params
    B, dim = x.shape

    tile, n_tiles, B_pad = _choose_tiling(B, tb)
    if B_pad != B:
        # Only the ragged-tail case copies x; exact-divisor tilings above avoid it.
        x = jnp.pad(x, ((0, B_pad - B), (0, 0)))

    const2d = lambda shape: pl.BlockSpec(shape, lambda i: (0, 0))  # VMEM-resident

    recon, z = pl.pallas_call(
        ae_kernel,
        out_shape=(
            jax.ShapeDtypeStruct((B_pad, dim), out_dtype),
            jax.ShapeDtypeStruct((B_pad, H2), out_dtype),
        ),
        grid_spec=pltpu.PrefetchScalarGridSpec(
            num_scalar_prefetch=0,
            grid=(n_tiles,),
            in_specs=[
                pl.BlockSpec((tile, dim), lambda i: (i, 0)),    # x tile
                const2d((dim, H1)), const2d((1, H1)),           # fc1
                const2d((H1, H2)), const2d((1, H2)),            # fc2
                const2d((H2, H1)), const2d((1, H1)),            # fc5
                const2d((H1, dim)), const2d((1, dim)),          # fc6
            ],
            out_specs=[
                pl.BlockSpec((tile, dim), lambda i: (i, 0)),
                pl.BlockSpec((tile, H2), lambda i: (i, 0)),
            ],
        ),
        compiler_params=pltpu.CompilerParams(
            dimension_semantics=("parallel",),
            # VMEM @ tile=1024, dim=128: x/recon tiles 0.5 MiB each, z 1 MiB,
            # bf16 weights ~0.75 MiB, activations ~1.5-3 MiB. Even double-buffered
            # this is well under 32 MiB on every generation; set the limit
            # explicitly because v5e's scoped default is only 16 MiB (v7x physical
            # VMEM is 64 MiB, so do not raise this assuming v6e's 128 MiB).
            vmem_limit_bytes=32 * 1024 * 1024,
        ),
    )(x, w1, b1, w2, b2, w5, b5, w6, b6)

    if B_pad != B:
        recon, z = recon[:B], z[:B]
    return recon, z


def init_params(key, dim):
    """Deterministic init mimicking nn.Linear shapes; stored as (in, out)."""
    ks = jax.random.split(key, 8)

    def lin(kw, kb, fan_in, fan_out):
        bound = 1.0 / (fan_in ** 0.5)
        w = jax.random.uniform(kw, (fan_in, fan_out), jnp.float32, -bound, bound)
        b = jax.random.uniform(kb, (1, fan_out), jnp.float32, -bound, bound)
        return w, b

    w1, b1 = lin(ks[0], ks[1], dim, H1)
    w2, b2 = lin(ks[2], ks[3], H1, H2)
    w5, b5 = lin(ks[4], ks[5], H2, H1)
    w6, b6 = lin(ks[6], ks[7], H1, dim)
    return (w1, b1, w2, b2, w5, b5, w6, b6)


def ae_reference(x, params):
    w1, b1, w2, b2, w5, b5, w6, b6 = params
    h1 = jnp.tanh(x @ w1 + b1)
    z = jnp.tanh(h1 @ w2 + b2)
    h3 = jnp.tanh(z @ w5 + b5)
    recon = jnp.tanh(h3 @ w6 + b6)
    return recon, z


if __name__ == "__main__":
    key = jax.random.PRNGKey(0)
    dim = 128
    k_x, k_p = jax.random.split(key)
    params = init_params(k_p, dim)

    # 1) f32 everywhere: single-tile path, tight check against the JAX reference.
    B = 8
    x = jax.random.normal(k_x, (B, dim), jnp.float32)
    p_f32 = prepare_params(params, mxu_dtype=jnp.float32, act_dtype=jnp.float32)
    recon_f32, z_f32 = ae_forward(x, p_f32)
    jax.block_until_ready((recon_f32, z_f32))
    recon_ref, z_ref = ae_reference(x, params)
    assert recon_f32.shape == (B, dim) and z_f32.shape == (B, H2)
    assert jnp.allclose(recon_f32, recon_ref, atol=1e-5, rtol=1e-5)
    assert jnp.allclose(z_f32, z_ref, atol=1e-5, rtol=1e-5)

    # 2) production config: bf16 MXU inputs; bf16 bias-add/tanh on v6e/v7x
    #    (f32 on v5e, which lacks a bf16 VPU/EUP). Loose check.
    p_fast = prepare_params(params, mxu_dtype=jnp.bfloat16,
                            act_dtype=default_act_dtype())
    recon_bf, z_bf = ae_forward(x, p_fast)
    jax.block_until_ready((recon_bf, z_bf))
    assert jnp.allclose(recon_bf, recon_ref, atol=5e-2, rtol=5e-2)
    assert jnp.allclose(z_bf, z_ref, atol=5e-2, rtol=5e-2)

    # 3) multi-tile + ragged-tail path (B not a multiple of the tile), f32, tight.
    B2 = 20
    x2 = jax.random.normal(jax.random.PRNGKey(1), (B2, dim), jnp.float32)
    recon2, z2 = ae_forward(x2, p_f32, tb=8)
    jax.block_until_ready((recon2, z2))
    recon2_ref, z2_ref = ae_reference(x2, params)
    assert recon2.shape == (B2, dim) and z2.shape == (B2, H2)
    assert jnp.allclose(recon2, recon2_ref, atol=1e-5, rtol=1e-5)
    assert jnp.allclose(z2, z2_ref, atol=1e-5, rtol=1e-5)

    print("KERNEL_OK")
</pallas_src>

<mosaic_0001>
module attributes {stable_mosaic.version = 11 : i64} {
  func.func @ae_kernel(%arg0: i32, %arg1: memref<8x128xf32, #tpu.memory_space<vmem>>, %arg2: memref<128x512xf32, #tpu.memory_space<vmem>>, %arg3: memref<1x512xf32, #tpu.memory_space<vmem>>, %arg4: memref<512x256xf32, #tpu.memory_space<vmem>>, %arg5: memref<1x256xf32, #tpu.memory_space<vmem>>, %arg6: memref<256x512xf32, #tpu.memory_space<vmem>>, %arg7: memref<1x512xf32, #tpu.memory_space<vmem>>, %arg8: memref<512x128xf32, #tpu.memory_space<vmem>>, %arg9: memref<1x128xf32, #tpu.memory_space<vmem>>, %arg10: memref<8x128xf32, #tpu.memory_space<vmem>>, %arg11: memref<8x256xf32, #tpu.memory_space<vmem>>) attributes {dimension_semantics = [#tpu.dimension_semantics<parallel>], iteration_bounds = array<i64: 1>, scalar_prefetch = 0 : i64, scratch_operands = 0 : i64, tpu.core_type = #tpu.core_type<tc>, window_params = [{transform_indices = @transform_0, window_bounds = array<i64: 8, 128>}, {pipeline_mode = #tpu.pipeline_mode<synchronous>, transform_indices = @transform_1, window_bounds = array<i64: 128, 512>}, {pipeline_mode = #tpu.pipeline_mode<synchronous>, transform_indices = @transform_2, window_bounds = array<i64: 1, 512>}, {pipeline_mode = #tpu.pipeline_mode<synchronous>, transform_indices = @transform_3, window_bounds = array<i64: 512, 256>}, {pipeline_mode = #tpu.pipeline_mode<synchronous>, transform_indices = @transform_4, window_bounds = array<i64: 1, 256>}, {pipeline_mode = #tpu.pipeline_mode<synchronous>, transform_indices = @transform_5, window_bounds = array<i64: 256, 512>}, {pipeline_mode = #tpu.pipeline_mode<synchronous>, transform_indices = @transform_6, window_bounds = array<i64: 1, 512>}, {pipeline_mode = #tpu.pipeline_mode<synchronous>, transform_indices = @transform_7, window_bounds = array<i64: 512, 128>}, {pipeline_mode = #tpu.pipeline_mode<synchronous>, transform_indices = @transform_8, window_bounds = array<i64: 1, 128>}, {transform_indices = @transform_9, window_bounds = array<i64: 8, 128>}, {transform_indices = @transform_10, window_bounds = array<i64: 8, 256>}]} {
    %c0 = arith.constant 0 : index
    %c0_0 = arith.constant 0 : index
    %0 = vector.load %arg1[%c0, %c0_0] : memref<8x128xf32, #tpu.memory_space<vmem>>, vector<8x128xf32>
    %c0_1 = arith.constant 0 : index
    %c0_2 = arith.constant 0 : index
    %1 = vector.load %arg2[%c0_1, %c0_2] : memref<128x512xf32, #tpu.memory_space<vmem>>, vector<128x512xf32>
    %cst = arith.constant dense<0.000000e+00> : vector<8x512xf32>
    %2 = tpu.matmul %0, %1, %cst {dimension_numbers = #tpu.dot_dimension_numbers<[1], [0], [0], [1], [0, 0, 1, 1], [], []>} : vector<8x128xf32>, vector<128x512xf32>, vector<8x512xf32> -> vector<8x512xf32>
    %c0_3 = arith.constant 0 : index
    %c0_4 = arith.constant 0 : index
    %3 = vector.load %arg3[%c0_3, %c0_4] : memref<1x512xf32, #tpu.memory_space<vmem>>, vector<1x512xf32>
    %4 = vector.broadcast %3 : vector<1x512xf32> to vector<8x512xf32>
    %5 = arith.addf %2, %4 : vector<8x512xf32>
    %6 = math.tanh %5 : vector<8x512xf32>
    %c0_5 = arith.constant 0 : index
    %c0_6 = arith.constant 0 : index
    %7 = vector.load %arg4[%c0_5, %c0_6] : memref<512x256xf32, #tpu.memory_space<vmem>>, vector<512x256xf32>
    %cst_7 = arith.constant dense<0.000000e+00> : vector<8x256xf32>
    %8 = tpu.matmul %6, %7, %cst_7 {dimension_numbers = #tpu.dot_dimension_numbers<[1], [0], [0], [1], [0, 0, 1, 1], [], []>} : vector<8x512xf32>, vector<512x256xf32>, vector<8x256xf32> -> vector<8x256xf32>
    %c0_8 = arith.constant 0 : index
    %c0_9 = arith.constant 0 : index
    %9 = vector.load %arg5[%c0_8, %c0_9] : memref<1x256xf32, #tpu.memory_space<vmem>>, vector<1x256xf32>
    %10 = vector.broadcast %9 : vector<1x256xf32> to vector<8x256xf32>
    %11 = arith.addf %8, %10 : vector<8x256xf32>
    %12 = math.tanh %11 : vector<8x256xf32>
    %c0_10 = arith.constant 0 : index
    %c0_11 = arith.constant 0 : index
    %13 = vector.load %arg6[%c0_10, %c0_11] : memref<256x512xf32, #tpu.memory_space<vmem>>, vector<256x512xf32>
    %cst_12 = arith.constant dense<0.000000e+00> : vector<8x512xf32>
    %14 = tpu.matmul %12, %13, %cst_12 {dimension_numbers = #tpu.dot_dimension_numbers<[1], [0], [0], [1], [0, 0, 1, 1], [], []>} : vector<8x256xf32>, vector<256x512xf32>, vector<8x512xf32> -> vector<8x512xf32>
    %c0_13 = arith.constant 0 : index
    %c0_14 = arith.constant 0 : index
    %15 = vector.load %arg7[%c0_13, %c0_14] : memref<1x512xf32, #tpu.memory_space<vmem>>, vector<1x512xf32>
    %16 = vector.broadcast %15 : vector<1x512xf32> to vector<8x512xf32>
    %17 = arith.addf %14, %16 : vector<8x512xf32>
    %18 = math.tanh %17 : vector<8x512xf32>
    %c0_15 = arith.constant 0 : index
    %c0_16 = arith.constant 0 : index
    %19 = vector.load %arg8[%c0_15, %c0_16] : memref<512x128xf32, #tpu.memory_space<vmem>>, vector<512x128xf32>
    %cst_17 = arith.constant dense<0.000000e+00> : vector<8x128xf32>
    %20 = tpu.matmul %18, %19, %cst_17 {dimension_numbers = #tpu.dot_dimension_numbers<[1], [0], [0], [1], [0, 0, 1, 1], [], []>} : vector<8x512xf32>, vector<512x128xf32>, vector<8x128xf32> -> vector<8x128xf32>
    %c0_18 = arith.constant 0 : index
    %c0_19 = arith.constant 0 : index
    %21 = vector.load %arg9[%c0_18, %c0_19] : memref<1x128xf32, #tpu.memory_space<vmem>>, vector<1x128xf32>
    %22 = vector.broadcast %21 : vector<1x128xf32> to vector<8x128xf32>
    %23 = arith.addf %20, %22 : vector<8x128xf32>
    %24 = math.tanh %23 : vector<8x128xf32>
    %c0_20 = arith.constant 0 : index
    %c0_21 = arith.constant 0 : index
    %25 = vector.load %arg10[%c0_20, %c0_21] : memref<8x128xf32, #tpu.memory_space<vmem>>, vector<8x128xf32>
    tpu.vector_store %arg10[%c0_20, %c0_21], %24 {strides = array<i32>} : memref<8x128xf32, #tpu.memory_space<vmem>>, vector<8x128xf32>,
    %c0_22 = arith.constant 0 : index
    %c0_23 = arith.constant 0 : index
    %26 = vector.load %arg11[%c0_22, %c0_23] : memref<8x256xf32, #tpu.memory_space<vmem>>, vector<8x256xf32>
    tpu.vector_store %arg11[%c0_22, %c0_23], %12 {strides = array<i32>} : memref<8x256xf32, #tpu.memory_space<vmem>>, vector<8x256xf32>,
    return
  }
  func.func @transform_0(%arg0: i32) -> (i32, i32) {
    %c0_i32 = arith.constant 0 : i32
    %c0_i32_0 = arith.constant 0 : i32
    return %arg0, %c0_i32 : i32, i32
  }
  func.func @transform_1(%arg0: i32) -> (i32, i32) {
    %c0_i32 = arith.constant 0 : i32
    %c0_i32_0 = arith.constant 0 : i32
    %c0_i32_1 = arith.constant 0 : i32
    return %c0_i32, %c0_i32_0 : i32, i32
  }
  func.func @transform_2(%arg0: i32) -> (i32, i32) {
    %c0_i32 = arith.constant 0 : i32
    %c0_i32_0 = arith.constant 0 : i32
    %c0_i32_1 = arith.constant 0 : i32
    return %c0_i32, %c0_i32_0 : i32, i32
  }
  func.func @transform_3(%arg0: i32) -> (i32, i32) {
    %c0_i32 = arith.constant 0 : i32
    %c0_i32_0 = arith.constant 0 : i32
    %c0_i32_1 = arith.constant 0 : i32
    return %c0_i32, %c0_i32_0 : i32, i32
  }
  func.func @transform_4(%arg0: i32) -> (i32, i32) {
    %c0_i32 = arith.constant 0 : i32
    %c0_i32_0 = arith.constant 0 : i32
    %c0_i32_1 = arith.constant 0 : i32
    return %c0_i32, %c0_i32_0 : i32, i32
  }
  func.func @transform_5(%arg0: i32) -> (i32, i32) {
    %c0_i32 = arith.constant 0 : i32
    %c0_i32_0 = arith.constant 0 : i32
    %c0_i32_1 = arith.constant 0 : i32
    return %c0_i32, %c0_i32_0 : i32, i32
  }
  func.func @transform_6(%arg0: i32) -> (i32, i32) {
    %c0_i32 = arith.constant 0 : i32
    %c0_i32_0 = arith.constant 0 : i32
    %c0_i32_1 = arith.constant 0 : i32
    return %c0_i32, %c0_i32_0 : i32, i32
  }
  func.func @transform_7(%arg0: i32) -> (i32, i32) {
    %c0_i32 = arith.constant 0 : i32
    %c0_i32_0 = arith.constant 0 : i32
    %c0_i32_1 = arith.constant 0 : i32
    return %c0_i32, %c0_i32_0 : i32, i32
  }
  func.func @transform_8(%arg0: i32) -> (i32, i32) {
    %c0_i32 = arith.constant 0 : i32
    %c0_i32_0 = arith.constant 0 : i32
    %c0_i32_1 = arith.constant 0 : i32
    return %c0_i32, %c0_i32_0 : i32, i32
  }
  func.func @transform_9(%arg0: i32) -> (i32, i32) {
    %c0_i32 = arith.constant 0 : i32
    %c0_i32_0 = arith.constant 0 : i32
    return %arg0, %c0_i32 : i32, i32
  }
  func.func @transform_10(%arg0: i32) -> (i32, i32) {
    %c0_i32 = arith.constant 0 : i32
    %c0_i32_0 = arith.constant 0 : i32
    return %arg0, %c0_i32 : i32, i32
  }
}

</mosaic_0001>

<llo_original>
// kernel: tpu_custom_call.1
$region0: #{tpu_custom_call.1}
  #allocation0 [shape = 'u32[]', space=smem, size = 0x4, offset = 0x4, fixed_abs, tag = 'smem constant byte address 0x4 - core index']
  #allocation1 [shape = 'u32[72,128]{1,0:T(1,128)}', space=vmem, size = 0x9000, scoped, tag = 'internal scratch']
  %s0 = inlined_call_operand.hbm [shape: f32[8,128], index: 0, kind: input, shape index: {}]
  %s1 = inlined_call_operand.hbm [shape: f32[128,512], index: 1, kind: input, shape index: {}]
  %s2 = inlined_call_operand.hbm [shape: f32[1,512], index: 2, kind: input, shape index: {}]
  %s3 = inlined_call_operand.hbm [shape: f32[512,256], index: 3, kind: input, shape index: {}]
  %s4 = inlined_call_operand.hbm [shape: f32[1,256], index: 4, kind: input, shape index: {}]
  %s5 = inlined_call_operand.hbm [shape: f32[256,512], index: 5, kind: input, shape index: {}]
  %s6 = inlined_call_operand.vmem [shape: f32[1,512], index: 6, kind: input, shape index: {}]
  %s7 = inlined_call_operand.hbm [shape: f32[512,128], index: 7, kind: input, shape index: {}]
  %s8 = inlined_call_operand.vmem [shape: f32[1,128], index: 8, kind: input, shape index: {}]
  %s9 = inlined_call_operand.hbm [shape: f32[8,128], index: 9, kind: output, shape index: {0}]
  %s10 = inlined_call_operand.hbm [shape: f32[8,256], index: 10, kind: output, shape index: {1}]
  %11 = xla_tuple %s9, %s10
  %s12 = sld [smem:[#allocation0]]
  $region82: #{tpu_custom_call.1} parent=0
    _
  %s14 = ssub.s32 1, %s12
  %s15 = scalar_select 0, %s14, %s12
  $region1: #{tpu_custom_call.1} parent=0
    #allocation2 [shape = 'u8[4096]{0}', space=vmem, size = 0x1000, scoped, tag = 'input window, operand 0, single buffered']
    #allocation3 [shape = 's32[1]{0}', space=sflag, size = 0x4, scoped, tag = 'scoped memory for tpu_custom_call.1']
    #allocation4 [shape = 's32[1]{0}', space=sflag, size = 0x4, scoped, tag = 'scoped memory for tpu_custom_call.1']
    #allocation5 [shape = 'u8[262144]{0}', space=vmem, size = 0x40000, scoped, tag = 'input window, operand 1, single buffered']
    #allocation6 [shape = 's32[1]{0}', space=sflag, size = 0x4, scoped, tag = 'scoped memory for tpu_custom_call.1']
    #allocation7 [shape = 'u8[2048]{0}', space=vmem, size = 0x800, scoped, tag = 'input window, operand 2, single buffered']
    #allocation8 [shape = 'u8[524288]{0}', space=vmem, size = 0x80000, scoped, tag = 'input window, operand 3, single buffered']
    #allocation9 [shape = 's32[1]{0}', space=sflag, size = 0x4, scoped, tag = 'scoped memory for tpu_custom_call.1']
    #allocation10 [shape = 'u8[1024]{0}', space=vmem, size = 0x400, scoped, tag = 'input window, operand 4, single buffered']
    #allocation11 [shape = 'u8[524288]{0}', space=vmem, size = 0x80000, scoped, tag = 'input window, operand 5, single buffered']
    #allocation12 [shape = 's32[1]{0}', space=sflag, size = 0x4, scoped, tag = 'scoped memory for tpu_custom_call.1']
    #allocation13 [shape = 'u8[262144]{0}', space=vmem, size = 0x40000, scoped, tag = 'input window, operand 7, single buffered']
    #allocation14 [shape = 'u8[4096]{0}', space=vmem, size = 0x1000, scoped, tag = 'output window, operand 0, single buffered']
    #allocation15 [shape = 'u8[8192]{0}', space=vmem, size = 0x2000, scoped, tag = 'output window, operand 1, single buffered']
    #allocation16 [shape = 's32[1]{0}', space=sflag, size = 0x4, scoped, tag = 'scoped memory for tpu_custom_call.1']
    %16 = vsyncpa [#allocation3], 0
    %17 = vsyncpa [#allocation6], 0
    %18 = vsyncpa [#allocation9], 0
    %19 = vsyncpa [#allocation12], 0
    %20 = vsyncpa [#allocation4], 0
    %21 = vsyncpa [#allocation16], 0
    // Predicated region
    $region2: #{tpu_custom_call.1} parent=1 // pred_check
      _
    $region3: #{tpu_custom_call.1} parent=1 // pred_check_branch
      %23 = sbr.rel (0) target = $region5
    $region4: #{tpu_custom_call.1} parent=1 // pred_region
      %25 = vsyncadd [#allocation3], 0
      %s27 = sshll.u32 %s0, 4
      %s28 = int_to_ptr.hbm [resolvable:$true] %s27
      %s29 = sshll.u32 [#allocation2], 4
      %s30 = int_to_ptr.vmem [resolvable:$true] %s29
      %32 = dma.hbm_to_vmem [thread:$0]  %s28, 128, %s30, [#allocation3]
    $region5: #{tpu_custom_call.1} parent=1 // pred_fallthru
      _
    // Predicated region
    $region6: #{tpu_custom_call.1} parent=1 // pred_check
      _
    $region7: #{tpu_custom_call.1} parent=1 // pred_check_branch
      %34 = sbr.rel (0) target = $region9
    $region8: #{tpu_custom_call.1} parent=1 // pred_region
      %36 = vsyncadd [#allocation6], 0
      %s37 = sshll.u32 %s1, 4
      %s38 = int_to_ptr.hbm [resolvable:$true] %s37
      %s39 = sshll.u32 [#allocation5], 4
      %s40 = int_to_ptr.vmem [resolvable:$true] %s39
      %45 = dma.hbm_to_vmem [thread:$0]  %s38, 8192, %s40, [#allocation6], 512, 512, 32
    $region9: #{tpu_custom_call.1} parent=1 // pred_fallthru
      _
    // Predicated region
    $region10: #{tpu_custom_call.1} parent=1 // pred_check
      _
    $region11: #{tpu_custom_call.1} parent=1 // pred_check_branch
      %47 = sbr.rel (0) target = $region13
    $region12: #{tpu_custom_call.1} parent=1 // pred_region
      %49 = vsyncadd [#allocation6], 0
      %s51 = sshll.u32 %s2, 4
      %s52 = int_to_ptr.hbm [resolvable:$true] %s51
      %s53 = sshll.u32 [#allocation7], 4
      %s54 = int_to_ptr.vmem [resolvable:$true] %s53
      %56 = dma.hbm_to_vmem [thread:$0]  %s52, 64, %s54, [#allocation6]
    $region13: #{tpu_custom_call.1} parent=1 // pred_fallthru
      _
    // Predicated region
    $region14: #{tpu_custom_call.1} parent=1 // pred_check
      _
    $region15: #{tpu_custom_call.1} parent=1 // pred_check_branch
      %58 = sbr.rel (0) target = $region17
    $region16: #{tpu_custom_call.1} parent=1 // pred_region
      %60 = vsyncadd [#allocation9], 0
      %s61 = sshll.u32 %s3, 4
      %s62 = int_to_ptr.hbm [resolvable:$true] %s61
      %s63 = sshll.u32 [#allocation8], 4
      %s64 = int_to_ptr.vmem [resolvable:$true] %s63
      %69 = dma.hbm_to_vmem [thread:$0]  %s62, 16384, %s64, [#allocation9], 256, 256, 16
    $region17: #{tpu_custom_call.1} parent=1 // pred_fallthru
      _
    // Predicated region
    $region18: #{tpu_custom_call.1} parent=1 // pred_check
      _
    $region19: #{tpu_custom_call.1} parent=1 // pred_check_branch
      %71 = sbr.rel (0) target = $region21
    $region20: #{tpu_custom_call.1} parent=1 // pred_region
      %73 = vsyncadd [#allocation9], 0
      %s75 = sshll.u32 %s4, 4
      %s76 = int_to_ptr.hbm [resolvable:$true] %s75
      %s77 = sshll.u32 [#allocation10], 4
      %s78 = int_to_ptr.vmem [resolvable:$true] %s77
      %80 = dma.hbm_to_vmem [thread:$0]  %s76, 32, %s78, [#allocation9]
    $region21: #{tpu_custom_call.1} parent=1 // pred_fallthru
      _
    // Predicated region
    $region22: #{tpu_custom_call.1} parent=1 // pred_check
      _
    $region23: #{tpu_custom_call.1} parent=1 // pred_check_branch
      %82 = sbr.rel (0) target = $region25
    $region24: #{tpu_custom_call.1} parent=1 // pred_region
      %84 = vsyncadd [#allocation12], 0
      %s85 = sshll.u32 %s5, 4
      %s86 = int_to_ptr.hbm [resolvable:$true] %s85
      %s87 = sshll.u32 [#allocation11], 4
      %s88 = int_to_ptr.vmem [resolvable:$true] %s87
      %93 = dma.hbm_to_vmem [thread:$0]  %s86, 16384, %s88, [#allocation12], 512, 512, 32
    $region25: #{tpu_custom_call.1} parent=1 // pred_fallthru
      _
    // Predicated region
    $region26: #{tpu_custom_call.1} parent=1 // pred_check
      _
    $region27: #{tpu_custom_call.1} parent=1 // pred_check_branch
      %95 = sbr.rel (0) target = $region29
    $region28: #{tpu_custom_call.1} parent=1 // pred_region
      _
    $region29: #{tpu_custom_call.1} parent=1 // pred_fallthru
      _
    // Predicated region
    $region30: #{tpu_custom_call.1} parent=1 // pred_check
      _
    $region31: #{tpu_custom_call.1} parent=1 // pred_check_branch
      %97 = sbr.rel (0) target = $region33
    $region32: #{tpu_custom_call.1} parent=1 // pred_region
      %99 = vsyncadd [#allocation12], 0
      %s100 = sshll.u32 %s7, 4
      %s101 = int_to_ptr.hbm [resolvable:$true] %s100
      %s102 = sshll.u32 [#allocation13], 4
      %s103 = int_to_ptr.vmem [resolvable:$true] %s102
      %108 = dma.hbm_to_vmem [thread:$0]  %s101, 8192, %s103, [#allocation12], 128, 128, 8
    $region33: #{tpu_custom_call.1} parent=1 // pred_fallthru
      _
    // Predicated region
    $region34: #{tpu_custom_call.1} parent=1 // pred_check
      _
    $region35: #{tpu_custom_call.1} parent=1 // pred_check_branch
      %110 = sbr.rel (0) target = $region37
    $region36: #{tpu_custom_call.1} parent=1 // pred_region
      _
    $region37: #{tpu_custom_call.1} parent=1 // pred_fallthru
      _
    // Predicated region
    $region38: #{tpu_custom_call.1} parent=1 // pred_check
      _
    $region39: #{tpu_custom_call.1} parent=1 // pred_check_branch
      %112 = sbr.rel (0) target = $region41
    $region40: #{tpu_custom_call.1} parent=1 // pred_region
      %114 = dma.done [#allocation3], 128
    $region41: #{tpu_custom_call.1} parent=1 // pred_fallthru
      _
    // Predicated region
    $region42: #{tpu_custom_call.1} parent=1 // pred_check
      _
    $region43: #{tpu_custom_call.1} parent=1 // pred_check_branch
      %116 = sbr.rel (0) target = $region45
    $region44: #{tpu_custom_call.1} parent=1 // pred_region
      %118 = dma.done [#allocation6], 8192
    $region45: #{tpu_custom_call.1} parent=1 // pred_fallthru
      _
    // Predicated region
    $region46: #{tpu_custom_call.1} parent=1 // pred_check
      _
    $region47: #{tpu_custom_call.1} parent=1 // pred_check_branch
      %120 = sbr.rel (0) target = $region49
    $region48: #{tpu_custom_call.1} parent=1 // pred_region
      %122 = dma.done [#allocation6], 64
    $region49: #{tpu_custom_call.1} parent=1 // pred_fallthru
      _
    // Predicated region
    $region50: #{tpu_custom_call.1} parent=1 // pred_check
      _
    $region51: #{tpu_custom_call.1} parent=1 // pred_check_branch
      %124 = sbr.rel (0) target = $region53
    $region52: #{tpu_custom_call.1} parent=1 // pred_region
      %126 = dma.done [#allocation9], 16384
    $region53: #{tpu_custom_call.1} parent=1 // pred_fallthru
      _
    // Predicated region
    $region54: #{tpu_custom_call.1} parent=1 // pred_check
      _
    $region55: #{tpu_custom_call.1} parent=1 // pred_check_branch
      %128 = sbr.rel (0) target = $region57
    $region56: #{tpu_custom_call.1} parent=1 // pred_region
      %130 = dma.done [#allocation9], 32
    $region57: #{tpu_custom_call.1} parent=1 // pred_fallthru
      _
    // Predicated region
    $region58: #{tpu_custom_call.1} parent=1 // pred_check
      _
    $region59: #{tpu_custom_call.1} parent=1 // pred_check_branch
      %132 = sbr.rel (0) target = $region61
    $region60: #{tpu_custom_call.1} parent=1 // pred_region
      %134 = dma.done [#allocation12], 16384
    $region61: #{tpu_custom_call.1} parent=1 // pred_fallthru
      _
    // Predicated region
    $region62: #{tpu_custom_call.1} parent=1 // pred_check
      _
    $region63: #{tpu_custom_call.1} parent=1 // pred_check_branch
      %136 = sbr.rel (0) target = $region65
    $region64: #{tpu_custom_call.1} parent=1 // pred_region
      %138 = dma.done [#allocation12], 8192
    $region65: #{tpu_custom_call.1} parent=1 // pred_fallthru
      _
    %v139 = vld [vmem:[#allocation2] sm:$0xff]
    %v140 = vld [vmem:[#allocation5] sm:$0xff]
    %v141 = vld [vmem:[#allocation5 + $0x8] sm:$0xff]
    %v142 = vld [vmem:[#allocation5 + $0x10] sm:$0xff]
    %v143 = vld [vmem:[#allocation5 + $0x18] sm:$0xff]
    %v144 = vld [vmem:[#allocation5 + $0x20] sm:$0xff]
    %v145 = vld [vmem:[#allocation5 + $0x28] sm:$0xff]
    %v146 = vld [vmem:[#allocation5 + $0x30] sm:$0xff]
    %v147 = vld [vmem:[#allocation5 + $0x38] sm:$0xff]
    %v148 = vld [vmem:[#allocation5 + $0x40] sm:$0xff]
    %v149 = vld [vmem:[#allocation5 + $0x48] sm:$0xff]
    %v150 = vld [vmem:[#allocation5 + $0x50] sm:$0xff]
    %v151 = vld [vmem:[#allocation5 + $0x58] sm:$0xff]
    %v152 = vld [vmem:[#allocation5 + $0x60] sm:$0xff]
    %v153 = vld [vmem:[#allocation5 + $0x68] sm:$0xff]
    %v154 = vld [vmem:[#allocation5 + $0x70] sm:$0xff]
    %v155 = vld [vmem:[#allocation5 + $0x78] sm:$0xff]
    %v156 = vld [vmem:[#allocation5 + $0x80] sm:$0xff]
    %v157 = vld [vmem:[#allocation5 + $0x88] sm:$0xff]
    %v158 = vld [vmem:[#allocation5 + $0x90] sm:$0xff]
    %v159 = vld [vmem:[#allocation5 + $0x98] sm:$0xff]
    %v160 = vld [vmem:[#allocation5 + $0xa0] sm:$0xff]
    %v161 = vld [vmem:[#allocation5 + $0xa8] sm:$0xff]
    %v162 = vld [vmem:[#allocation5 + $0xb0] sm:$0xff]
    %v163 = vld [vmem:[#allocation5 + $0xb8] sm:$0xff]
    %v164 = vld [vmem:[#allocation5 + $0xc0] sm:$0xff]
    %v165 = vld [vmem:[#allocation5 + $0xc8] sm:$0xff]
    %v166 = vld [vmem:[#allocation5 + $0xd0] sm:$0xff]
    %v167 = vld [vmem:[#allocation5 + $0xd8] sm:$0xff]
    %v168 = vld [vmem:[#allocation5 + $0xe0] sm:$0xff]
    %v169 = vld [vmem:[#allocation5 + $0xe8] sm:$0xff]
    %v170 = vld [vmem:[#allocation5 + $0xf0] sm:$0xff]
    %v171 = vld [vmem:[#allocation5 + $0xf8] sm:$0xff]
    %v172 = vld [vmem:[#allocation5 + $0x100] sm:$0xff]
    %v173 = vld [vmem:[#allocation5 + $0x108] sm:$0xff]
    %v174 = vld [vmem:[#allocation5 + $0x110] sm:$0xff]
    %v175 = vld [vmem:[#allocation5 + $0x118] sm:$0xff]
    %v176 = vld [vmem:[#allocation5 + $0x120] sm:$0xff]
    %v177 = vld [vmem:[#allocation5 + $0x128] sm:$0xff]
    %v178 = vld [vmem:[#allocation5 + $0x130] sm:$0xff]
    %v179 = vld [vmem:[#allocation5 + $0x138] sm:$0xff]
    %v180 = vld [vmem:[#allocation5 + $0x140] sm:$0xff]
    %v181 = vld [vmem:[#allocation5 + $0x148] sm:$0xff]
    %v182 = vld [vmem:[#allocation5 + $0x150] sm:$0xff]
    %v183 = vld [vmem:[#allocation5 + $0x158] sm:$0xff]
    %v184 = vld [vmem:[#allocation5 + $0x160] sm:$0xff]
    %v185 = vld [vmem:[#allocation5 + $0x168] sm:$0xff]
    %v186 = vld [vmem:[#allocation5 + $0x170] sm:$0xff]
    %v187 = vld [vmem:[#allocation5 + $0x178] sm:$0xff]
    %v188 = vld [vmem:[#allocation5 + $0x180] sm:$0xff]
    %v189 = vld [vmem:[#allocation5 + $0x188] sm:$0xff]
    %v190 = vld [vmem:[#allocation5 + $0x190] sm:$0xff]
    %v191 = vld [vmem:[#allocation5 + $0x198] sm:$0xff]
    %v192 = vld [vmem:[#allocation5 + $0x1a0] sm:$0xff]
    %v193 = vld [vmem:[#allocation5 + $0x1a8] sm:$0xff]
    %v194 = vld [vmem:[#allocation5 + $0x1b0] sm:$0xff]
    %v195 = vld [vmem:[#allocation5 + $0x1b8] sm:$0xff]
    %v196 = vld [vmem:[#allocation5 + $0x1c0] sm:$0xff]
    %v197 = vld [vmem:[#allocation5 + $0x1c8] sm:$0xff]
    %v198 = vld [vmem:[#allocation5 + $0x1d0] sm:$0xff]
    %v199 = vld [vmem:[#allocation5 + $0x1d8] sm:$0xff]
    %v200 = vld [vmem:[#allocation5 + $0x1e0] sm:$0xff]
    %v201 = vld [vmem:[#allocation5 + $0x1e8] sm:$0xff]
    %v202 = vld [vmem:[#allocation5 + $0x1f0] sm:$0xff]
    %v203 = vld [vmem:[#allocation5 + $0x1f8] sm:$0xff]
    %v204 = vld [vmem:[#allocation7] sm:$0xf]
    %v206 = vperm.slane %v204, 0
    %v207 = vperm.slane %v204, 1
    %v208 = vperm.slane %v204, 2
    %v209 = vperm.slane %v204, 3
    %214 = vmatpush.msra.mxu0 %v200
    %215 = vmatpush.msra.mxu0 %v196
    %216 = vmatpush.msra.mxu0 %v192
    %217 = vmatpush.msra.mxu0 %v188
    %218 = vmatpush.msra.mxu0 %v184
    %219 = vmatpush.msra.mxu0 %v180
    %220 = vmatpush.msra.mxu0 %v176
    %221 = vmatpush.msra.mxu0 %v172
    %222 = vmatpush.msra.mxu0 %v168
    %223 = vmatpush.msra.mxu0 %v164
    %224 = vmatpush.msra.mxu0 %v160
    %225 = vmatpush.msra.mxu0 %v156
    %226 = vmatpush.msra.mxu0 %v152
    %227 = vmatpush.msra.mxu0 %v148
    %228 = vmatpush.msra.mxu0 %v144
    %229 = vmatpush.msra.mxu0 %v140
    %230 = vmatmul.f32.gmra.mxu0 %v139
    %v231 = vpop.f32.mrf.mxu0
    %v232 = vadd.f32 %v206, %v231
    %233 = vdwg.mxu0
    %234 = vmatpush.msra.mxu0 %v201
    %235 = vmatpush.msra.mxu0 %v197
    %236 = vmatpush.msra.mxu0 %v193
    %237 = vmatpush.msra.mxu0 %v189
    %238 = vmatpush.msra.mxu0 %v185
    %239 = vmatpush.msra.mxu0 %v181
    %240 = vmatpush.msra.mxu0 %v177
    %241 = vmatpush.msra.mxu0 %v173
    %242 = vmatpush.msra.mxu0 %v169
    %243 = vmatpush.msra.mxu0 %v165
    %244 = vmatpush.msra.mxu0 %v161
    %245 = vmatpush.msra.mxu0 %v157
    %246 = vmatpush.msra.mxu0 %v153
    %247 = vmatpush.msra.mxu0 %v149
    %248 = vmatpush.msra.mxu0 %v145
    %249 = vmatpush.msra.mxu0 %v141
    %250 = vmatmul.f32.gmra.mxu0 %v139
    %v251 = vpop.f32.mrf.mxu0
    %v252 = vadd.f32 %v207, %v251
    %253 = vdwg.mxu0
    %254 = vmatpush.msra.mxu0 %v202
    %255 = vmatpush.msra.mxu0 %v198
    %256 = vmatpush.msra.mxu0 %v194
    %257 = vmatpush.msra.mxu0 %v190
    %258 = vmatpush.msra.mxu0 %v186
    %259 = vmatpush.msra.mxu0 %v182
    %260 = vmatpush.msra.mxu0 %v178
    %261 = vmatpush.msra.mxu0 %v174
    %262 = vmatpush.msra.mxu0 %v170
    %263 = vmatpush.msra.mxu0 %v166
    %264 = vmatpush.msra.mxu0 %v162
    %265 = vmatpush.msra.mxu0 %v158
    %266 = vmatpush.msra.mxu0 %v154
    %267 = vmatpush.msra.mxu0 %v150
    %268 = vmatpush.msra.mxu0 %v146
    %269 = vmatpush.msra.mxu0 %v142
    %270 = vmatmul.f32.gmra.mxu0 %v139
    %v271 = vpop.f32.mrf.mxu0
    %v272 = vadd.f32 %v208, %v271
    %273 = vdwg.mxu0
    %274 = vmatpush.msra.mxu0 %v203
    %275 = vmatpush.msra.mxu0 %v199
    %276 = vmatpush.msra.mxu0 %v195
    %277 = vmatpush.msra.mxu0 %v191
    %278 = vmatpush.msra.mxu0 %v187
    %279 = vmatpush.msra.mxu0 %v183
    %280 = vmatpush.msra.mxu0 %v179
    %281 = vmatpush.msra.mxu0 %v175
    %282 = vmatpush.msra.mxu0 %v171
    %283 = vmatpush.msra.mxu0 %v167
    %284 = vmatpush.msra.mxu0 %v163
    %285 = vmatpush.msra.mxu0 %v159
    %286 = vmatpush.msra.mxu0 %v155
    %287 = vmatpush.msra.mxu0 %v151
    %288 = vmatpush.msra.mxu0 %v147
    %289 = vmatpush.msra.mxu0 %v143
    %290 = vmatmul.f32.gmra.mxu0 %v139
    %v291 = vpop.f32.mrf.mxu0
    %v292 = vadd.f32 %v209, %v291
    %293 = vdwg.mxu0
    %v294 = vtanh.pop %v232
    %v295 = vtanh.pop %v252
    %v296 = vtanh.pop %v272
    %v297 = vtanh.pop %v292
    %v298 = vld [vmem:[#allocation8] sm:$0xff]
    %v299 = vld [vmem:[#allocation8 + $0x8] sm:$0xff]
    %v300 = vld [vmem:[#allocation8 + $0x10] sm:$0xff]
    %v301 = vld [vmem:[#allocation8 + $0x18] sm:$0xff]
    %v302 = vld [vmem:[#allocation8 + $0x20] sm:$0xff]
    %v303 = vld [vmem:[#allocation8 + $0x28] sm:$0xff]
    %v304 = vld [vmem:[#allocation8 + $0x30] sm:$0xff]
    %v305 = vld [vmem:[#allocation8 + $0x38] sm:$0xff]
    %v306 = vld [vmem:[#allocation8 + $0x40] sm:$0xff]
    %v307 = vld [vmem:[#allocation8 + $0x48] sm:$0xff]
    %v308 = vld [vmem:[#allocation8 + $0x50] sm:$0xff]
    %v309 = vld [vmem:[#allocation8 + $0x58] sm:$0xff]
    %v310 = vld [vmem:[#allocation8 + $0x60] sm:$0xff]
    %v311 = vld [vmem:[#allocation8 + $0x68] sm:$0xff]
    %v312 = vld [vmem:[#allocation8 + $0x70] sm:$0xff]
    %v313 = vld [vmem:[#allocation8 + $0x78] sm:$0xff]
    %v314 = vld [vmem:[#allocation8 + $0x80] sm:$0xff]
    %v315 = vld [vmem:[#allocation8 + $0x88] sm:$0xff]
    %v316 = vld [vmem:[#allocation8 + $0x90] sm:$0xff]
    %v317 = vld [vmem:[#allocation8 + $0x98] sm:$0xff]
    %v318 = vld [vmem:[#allocation8 + $0xa0] sm:$0xff]
    %v319 = vld [vmem:[#allocation8 + $0xa8] sm:$0xff]
    %v320 = vld [vmem:[#allocation8 + $0xb0] sm:$0xff]
    %v321 = vld [vmem:[#allocation8 + $0xb8] sm:$0xff]
    %v322 = vld [vmem:[#allocation8 + $0xc0] sm:$0xff]
    %v323 = vld [vmem:[#allocation8 + $0xc8] sm:$0xff]
    %v324 = vld [vmem:[#allocation8 + $0xd0] sm:$0xff]
    %v325 = vld [vmem:[#allocation8 + $0xd8] sm:$0xff]
    %v326 = vld [vmem:[#allocation8 + $0xe0] sm:$0xff]
    %v327 = vld [vmem:[#allocation8 + $0xe8] sm:$0xff]
    %v328 = vld [vmem:[#allocation8 + $0xf0] sm:$0xff]
    %v329 = vld [vmem:[#allocation8 + $0xf8] sm:$0xff]
    %v330 = vld [vmem:[#allocation8 + $0x100] sm:$0xff]
    %v331 = vld [vmem:[#allocation8 + $0x108] sm:$0xff]
    %v332 = vld [vmem:[#allocation8 + $0x110] sm:$0xff]
    %v333 = vld [vmem:[#allocation8 + $0x118] sm:$0xff]
    %v334 = vld [vmem:[#allocation8 + $0x120] sm:$0xff]
    %v335 = vld [vmem:[#allocation8 + $0x128] sm:$0xff]
    %v336 = vld [vmem:[#allocation8 + $0x130] sm:$0xff]
    %v337 = vld [vmem:[#allocation8 + $0x138] sm:$0xff]
    %v338 = vld [vmem:[#allocation8 + $0x140] sm:$0xff]
    %v339 = vld [vmem:[#allocation8 + $0x148] sm:$0xff]
    %v340 = vld [vmem:[#allocation8 + $0x150] sm:$0xff]
    %v341 = vld [vmem:[#allocation8 + $0x158] sm:$0xff]
    %v342 = vld [vmem:[#allocation8 + $0x160] sm:$0xff]
    %v343 = vld [vmem:[#allocation8 + $0x168] sm:$0xff]
    %v344 = vld [vmem:[#allocation8 + $0x170] sm:$0xff]
    %v345 = vld [vmem:[#allocation8 + $0x178] sm:$0xff]
    %v346 = vld [vmem:[#allocation8 + $0x180] sm:$0xff]
    %v347 = vld [vmem:[#allocation8 + $0x188] sm:$0xff]
    %v348 = vld [vmem:[#allocation8 + $0x190] sm:$0xff]
    %v349 = vld [vmem:[#allocation8 + $0x198] sm:$0xff]
    %v350 = vld [vmem:[#allocation8 + $0x1a0] sm:$0xff]
    %v351 = vld [vmem:[#allocation8 + $0x1a8] sm:$0xff]
    %v352 = vld [vmem:[#allocation8 + $0x1b0] sm:$0xff]
    %v353 = vld [vmem:[#allocation8 + $0x1b8] sm:$0xff]
    %v354 = vld [vmem:[#allocation8 + $0x1c0] sm:$0xff]
    %v355 = vld [vmem:[#allocation8 + $0x1c8] sm:$0xff]
    %v356 = vld [vmem:[#allocation8 + $0x1d0] sm:$0xff]
    %v357 = vld [vmem:[#allocation8 + $0x1d8] sm:$0xff]
    %v358 = vld [vmem:[#allocation8 + $0x1e0] sm:$0xff]
    %v359 = vld [vmem:[#allocation8 + $0x1e8] sm:$0xff]
    %v360 = vld [vmem:[#allocation8 + $0x1f0] sm:$0xff]
    %v361 = vld [vmem:[#allocation8 + $0x1f8] sm:$0xff]
    %v362 = vld [vmem:[#allocation8 + $0x200] sm:$0xff]
    %v363 = vld [vmem:[#allocation8 + $0x208] sm:$0xff]
    %v364 = vld [vmem:[#allocation8 + $0x210] sm:$0xff]
    %v365 = vld [vmem:[#allocation8 + $0x218] sm:$0xff]
    %v366 = vld [vmem:[#allocation8 + $0x220] sm:$0xff]
    %v367 = vld [vmem:[#allocation8 + $0x228] sm:$0xff]
    %v368 = vld [vmem:[#allocation8 + $0x230] sm:$0xff]
    %v369 = vld [vmem:[#allocation8 + $0x238] sm:$0xff]
    %v370 = vld [vmem:[#allocation8 + $0x240] sm:$0xff]
    %v371 = vld [vmem:[#allocation8 + $0x248] sm:$0xff]
    %v372 = vld [vmem:[#allocation8 + $0x250] sm:$0xff]
    %v373 = vld [vmem:[#allocation8 + $0x258] sm:$0xff]
    %v374 = vld [vmem:[#allocation8 + $0x260] sm:$0xff]
    %v375 = vld [vmem:[#allocation8 + $0x268] sm:$0xff]
    %v376 = vld [vmem:[#allocation8 + $0x270] sm:$0xff]
    %v377 = vld [vmem:[#allocation8 + $0x278] sm:$0xff]
    %v378 = vld [vmem:[#allocation8 + $0x280] sm:$0xff]
    %v379 = vld [vmem:[#allocation8 + $0x288] sm:$0xff]
    %v380 = vld [vmem:[#allocation8 + $0x290] sm:$0xff]
    %v381 = vld [vmem:[#allocation8 + $0x298] sm:$0xff]
    %v382 = vld [vmem:[#allocation8 + $0x2a0] sm:$0xff]
    %v383 = vld [vmem:[#allocation8 + $0x2a8] sm:$0xff]
    %v384 = vld [vmem:[#allocation8 + $0x2b0] sm:$0xff]
    %v385 = vld [vmem:[#allocation8 + $0x2b8] sm:$0xff]
    %v386 = vld [vmem:[#allocation8 + $0x2c0] sm:$0xff]
    %v387 = vld [vmem:[#allocation8 + $0x2c8] sm:$0xff]
    %v388 = vld [vmem:[#allocation8 + $0x2d0] sm:$0xff]
    %v389 = vld [vmem:[#allocation8 + $0x2d8] sm:$0xff]
    %v390 = vld [vmem:[#allocation8 + $0x2e0] sm:$0xff]
    %v391 = vld [vmem:[#allocation8 + $0x2e8] sm:$0xff]
    %v392 = vld [vmem:[#allocation8 + $0x2f0] sm:$0xff]
    %v393 = vld [vmem:[#allocation8 + $0x2f8] sm:$0xff]
    %v394 = vld [vmem:[#allocation8 + $0x300] sm:$0xff]
    %v395 = vld [vmem:[#allocation8 + $0x308] sm:$0xff]
    %v396 = vld [vmem:[#allocation8 + $0x310] sm:$0xff]
    %v397 = vld [vmem:[#allocation8 + $0x318] sm:$0xff]
    %v398 = vld [vmem:[#allocation8 + $0x320] sm:$0xff]
    %v399 = vld [vmem:[#allocation8 + $0x328] sm:$0xff]
    %v400 = vld [vmem:[#allocation8 + $0x330] sm:$0xff]
    %v401 = vld [vmem:[#allocation8 + $0x338] sm:$0xff]
    %v402 = vld [vmem:[#allocation8 + $0x340] sm:$0xff]
    %v403 = vld [vmem:[#allocation8 + $0x348] sm:$0xff]
    %v404 = vld [vmem:[#allocation8 + $0x350] sm:$0xff]
    %v405 = vld [vmem:[#allocation8 + $0x358] sm:$0xff]
    %v406 = vld [vmem:[#allocation8 + $0x360] sm:$0xff]
    %v407 = vld [vmem:[#allocation8 + $0x368] sm:$0xff]
    %v408 = vld [vmem:[#allocation8 + $0x370] sm:$0xff]
    %v409 = vld [vmem:[#allocation8 + $0x378] sm:$0xff]
    %v410 = vld [vmem:[#allocation8 + $0x380] sm:$0xff]
    %v411 = vld [vmem:[#allocation8 + $0x388] sm:$0xff]
    %v412 = vld [vmem:[#allocation8 + $0x390] sm:$0xff]
    %v413 = vld [vmem:[#allocation8 + $0x398] sm:$0xff]
    %v414 = vld [vmem:[#allocation8 + $0x3a0] sm:$0xff]
    %v415 = vld [vmem:[#allocation8 + $0x3a8] sm:$0xff]
    %v416 = vld [vmem:[#allocation8 + $0x3b0] sm:$0xff]
    %v417 = vld [vmem:[#allocation8 + $0x3b8] sm:$0xff]
    %v418 = vld [vmem:[#allocation8 + $0x3c0] sm:$0xff]
    %v419 = vld [vmem:[#allocation8 + $0x3c8] sm:$0xff]
    %v420 = vld [vmem:[#allocation8 + $0x3d0] sm:$0xff]
    %v421 = vld [vmem:[#allocation8 + $0x3d8] sm:$0xff]
    %v422 = vld [vmem:[#allocation8 + $0x3e0] sm:$0xff]
    %v423 = vld [vmem:[#allocation8 + $0x3e8] sm:$0xff]
    %v424 = vld [vmem:[#allocation8 + $0x3f0] sm:$0xff]
    %v425 = vld [vmem:[#allocation8 + $0x3f8] sm:$0xff]
    %v426 = vld [vmem:[#allocation10] sm:$0x3]
    %v428 = vperm.slane %v426, 0
    %v429 = vperm.slane %v426, 1
    %432 = vmatpush.msra.mxu0 %v328
    %433 = vmatpush.msra.mxu0 %v326
    %434 = vmatpush.msra.mxu0 %v324
    %435 = vmatpush.msra.mxu0 %v322
    %436 = vmatpush.msra.mxu0 %v320
    %437 = vmatpush.msra.mxu0 %v318
    %438 = vmatpush.msra.mxu0 %v316
    %439 = vmatpush.msra.mxu0 %v314
    %440 = vmatpush.msra.mxu0 %v312
    %441 = vmatpush.msra.mxu0 %v310
    %442 = vmatpush.msra.mxu0 %v308
    %443 = vmatpush.msra.mxu0 %v306
    %444 = vmatpush.msra.mxu0 %v304
    %445 = vmatpush.msra.mxu0 %v302
    %446 = vmatpush.msra.mxu0 %v300
    %447 = vmatpush.msra.mxu0 %v298
    %448 = vmatmul.f32.gmra.mxu0 %v294
    %v449 = vpop.f32.mrf.mxu0
    %v450 = vadd.f32 %v428, %v449
    %451 = vdwg.mxu0
    %452 = vmatpush.msra.mxu0 %v360
    %453 = vmatpush.msra.mxu0 %v358
    %454 = vmatpush.msra.mxu0 %v356
    %455 = vmatpush.msra.mxu0 %v354
    %456 = vmatpush.msra.mxu0 %v352
    %457 = vmatpush.msra.mxu0 %v350
    %458 = vmatpush.msra.mxu0 %v348
    %459 = vmatpush.msra.mxu0 %v346
    %460 = vmatpush.msra.mxu0 %v344
    %461 = vmatpush.msra.mxu0 %v342
    %462 = vmatpush.msra.mxu0 %v340
    %463 = vmatpush.msra.mxu0 %v338
    %464 = vmatpush.msra.mxu0 %v336
    %465 = vmatpush.msra.mxu0 %v334
    %466 = vmatpush.msra.mxu0 %v332
    %467 = vmatpush.msra.mxu0 %v330
    %468 = vmatmul.f32.gmra.mxu0 %v295
    %v469 = vpop.f32.mrf.mxu0
    %v470 = vadd.f32 %v450, %v469
    %471 = vdwg.mxu0
    %472 = vmatpush.msra.mxu0 %v392
    %473 = vmatpush.msra.mxu0 %v390
    %474 = vmatpush.msra.mxu0 %v388
    %475 = vmatpush.msra.mxu0 %v386
    %476 = vmatpush.msra.mxu0 %v384
    %477 = vmatpush.msra.mxu0 %v382
    %478 = vmatpush.msra.mxu0 %v380
    %479 = vmatpush.msra.mxu0 %v378
    %480 = vmatpush.msra.mxu0 %v376
    %481 = vmatpush.msra.mxu0 %v374
    %482 = vmatpush.msra.mxu0 %v372
    %483 = vmatpush.msra.mxu0 %v370
    %484 = vmatpush.msra.mxu0 %v368
    %485 = vmatpush.msra.mxu0 %v366
    %486 = vmatpush.msra.mxu0 %v364
    %487 = vmatpush.msra.mxu0 %v362
    %488 = vmatmul.f32.gmra.mxu0 %v296
    %v489 = vpop.f32.mrf.mxu0
    %v490 = vadd.f32 %v470, %v489
    %491 = vdwg.mxu0
    %492 = vmatpush.msra.mxu0 %v424
    %493 = vmatpush.msra.mxu0 %v422
    %494 = vmatpush.msra.mxu0 %v420
    %495 = vmatpush.msra.mxu0 %v418
    %496 = vmatpush.msra.mxu0 %v416
    %497 = vmatpush.msra.mxu0 %v414
    %498 = vmatpush.msra.mxu0 %v412
    %499 = vmatpush.msra.mxu0 %v410
    %500 = vmatpush.msra.mxu0 %v408
    %501 = vmatpush.msra.mxu0 %v406
    %502 = vmatpush.msra.mxu0 %v404
    %503 = vmatpush.msra.mxu0 %v402
    %504 = vmatpush.msra.mxu0 %v400
    %505 = vmatpush.msra.mxu0 %v398
    %506 = vmatpush.msra.mxu0 %v396
    %507 = vmatpush.msra.mxu0 %v394
    %508 = vmatmul.f32.gmra.mxu0 %v297
    %v509 = vpop.f32.mrf.mxu0
    %v510 = vadd.f32 %v490, %v509
    %511 = vdwg.mxu0
    %512 = vmatpush.msra.mxu0 %v329
    %513 = vmatpush.msra.mxu0 %v327
    %514 = vmatpush.msra.mxu0 %v325
    %515 = vmatpush.msra.mxu0 %v323
    %516 = vmatpush.msra.mxu0 %v321
    %517 = vmatpush.msra.mxu0 %v319
    %518 = vmatpush.msra.mxu0 %v317
    %519 = vmatpush.msra.mxu0 %v315
    %520 = vmatpush.msra.mxu0 %v313
    %521 = vmatpush.msra.mxu0 %v311
    %522 = vmatpush.msra.mxu0 %v309
    %523 = vmatpush.msra.mxu0 %v307
    %524 = vmatpush.msra.mxu0 %v305
    %525 = vmatpush.msra.mxu0 %v303
    %526 = vmatpush.msra.mxu0 %v301
    %527 = vmatpush.msra.mxu0 %v299
    %528 = vmatmul.f32.gmra.mxu0 %v294
    %v529 = vpop.f32.mrf.mxu0
    %v530 = vadd.f32 %v429, %v529
    %531 = vdwg.mxu0
    %532 = vmatpush.msra.mxu0 %v361
    %533 = vmatpush.msra.mxu0 %v359
    %534 = vmatpush.msra.mxu0 %v357
    %535 = vmatpush.msra.mxu0 %v355
    %536 = vmatpush.msra.mxu0 %v353
    %537 = vmatpush.msra.mxu0 %v351
    %538 = vmatpush.msra.mxu0 %v349
    %539 = vmatpush.msra.mxu0 %v347
    %540 = vmatpush.msra.mxu0 %v345
    %541 = vmatpush.msra.mxu0 %v343
    %542 = vmatpush.msra.mxu0 %v341
    %543 = vmatpush.msra.mxu0 %v339
    %544 = vmatpush.msra.mxu0 %v337
    %545 = vmatpush.msra.mxu0 %v335
    %546 = vmatpush.msra.mxu0 %v333
    %547 = vmatpush.msra.mxu0 %v331
    %548 = vmatmul.f32.gmra.mxu0 %v295
    %v549 = vpop.f32.mrf.mxu0
    %v550 = vadd.f32 %v530, %v549
    %551 = vdwg.mxu0
    %552 = vmatpush.msra.mxu0 %v393
    %553 = vmatpush.msra.mxu0 %v391
    %554 = vmatpush.msra.mxu0 %v389
    %555 = vmatpush.msra.mxu0 %v387
    %556 = vmatpush.msra.mxu0 %v385
    %557 = vmatpush.msra.mxu0 %v383
    %558 = vmatpush.msra.mxu0 %v381
    %559 = vmatpush.msra.mxu0 %v379
    %560 = vmatpush.msra.mxu0 %v377
    %561 = vmatpush.msra.mxu0 %v375
    %562 = vmatpush.msra.mxu0 %v373
    %563 = vmatpush.msra.mxu0 %v371
    %564 = vmatpush.msra.mxu0 %v369
    %565 = vmatpush.msra.mxu0 %v367
    %566 = vmatpush.msra.mxu0 %v365
    %567 = vmatpush.msra.mxu0 %v363
    %568 = vmatmul.f32.gmra.mxu0 %v296
    %v569 = vpop.f32.mrf.mxu0
    %v570 = vadd.f32 %v550, %v569
    %571 = vdwg.mxu0
    %572 = vmatpush.msra.mxu0 %v425
    %573 = vmatpush.msra.mxu0 %v423
    %574 = vmatpush.msra.mxu0 %v421
    %575 = vmatpush.msra.mxu0 %v419
    %576 = vmatpush.msra.mxu0 %v417
    %577 = vmatpush.msra.mxu0 %v415
    %578 = vmatpush.msra.mxu0 %v413
    %579 = vmatpush.msra.mxu0 %v411
    %580 = vmatpush.msra.mxu0 %v409
    %581 = vmatpush.msra.mxu0 %v407
    %582 = vmatpush.msra.mxu0 %v405
    %583 = vmatpush.msra.mxu0 %v403
    %584 = vmatpush.msra.mxu0 %v401
    %585 = vmatpush.msra.mxu0 %v399
    %586 = vmatpush.msra.mxu0 %v397
    %587 = vmatpush.msra.mxu0 %v395
    %588 = vmatmul.f32.gmra.mxu0 %v297
    %v589 = vpop.f32.mrf.mxu0
    %v590 = vadd.f32 %v570, %v589
    %591 = vdwg.mxu0
    %v592 = vtanh.pop %v510
    %v593 = vtanh.pop %v590
    %v594 = vld [vmem:[#allocation11] sm:$0xff]
    %v595 = vld [vmem:[#allocation11 + $0x8] sm:$0xff]
    %v596 = vld [vmem:[#allocation11 + $0x10] sm:$0xff]
    %v597 = vld [vmem:[#allocation11 + $0x18] sm:$0xff]
    %v598 = vld [vmem:[#allocation11 + $0x20] sm:$0xff]
    %v599 = vld [vmem:[#allocation11 + $0x28] sm:$0xff]
    %v600 = vld [vmem:[#allocation11 + $0x30] sm:$0xff]
    %v601 = vld [vmem:[#allocation11 + $0x38] sm:$0xff]
    %v602 = vld [vmem:[#allocation11 + $0x40] sm:$0xff]
    %v603 = vld [vmem:[#allocation11 + $0x48] sm:$0xff]
    %v604 = vld [vmem:[#allocation11 + $0x50] sm:$0xff]
    %v605 = vld [vmem:[#allocation11 + $0x58] sm:$0xff]
    %v606 = vld [vmem:[#allocation11 + $0x60] sm:$0xff]
    %v607 = vld [vmem:[#allocation11 + $0x68] sm:$0xff]
    %v608 = vld [vmem:[#allocation11 + $0x70] sm:$0xff]
    %v609 = vld [vmem:[#allocation11 + $0x78] sm:$0xff]
    %v610 = vld [vmem:[#allocation11 + $0x80] sm:$0xff]
    %v611 = vld [vmem:[#allocation11 + $0x88] sm:$0xff]
    %v612 = vld [vmem:[#allocation11 + $0x90] sm:$0xff]
    %v613 = vld [vmem:[#allocation11 + $0x98] sm:$0xff]
    %v614 = vld [vmem:[#allocation11 + $0xa0] sm:$0xff]
    %v615 = vld [vmem:[#allocation11 + $0xa8] sm:$0xff]
    %v616 = vld [vmem:[#allocation11 + $0xb0] sm:$0xff]
    %v617 = vld [vmem:[#allocation11 + $0xb8] sm:$0xff]
    %v618 = vld [vmem:[#allocation11 + $0xc0] sm:$0xff]
    %v619 = vld [vmem:[#allocation11 + $0xc8] sm:$0xff]
    %v620 = vld [vmem:[#allocation11 + $0xd0] sm:$0xff]
    %v621 = vld [vmem:[#allocation11 + $0xd8] sm:$0xff]
    %v622 = vld [vmem:[#allocation11 + $0xe0] sm:$0xff]
    %v623 = vld [vmem:[#allocation11 + $0xe8] sm:$0xff]
    %v624 = vld [vmem:[#allocation11 + $0xf0] sm:$0xff]
    %v625 = vld [vmem:[#allocation11 + $0xf8] sm:$0xff]
    %v626 = vld [vmem:[#allocation11 + $0x100] sm:$0xff]
    %v627 = vld [vmem:[#allocation11 + $0x108] sm:$0xff]
    %v628 = vld [vmem:[#allocation11 + $0x110] sm:$0xff]
    %v629 = vld [vmem:[#allocation11 + $0x118] sm:$0xff]
    %v630 = vld [vmem:[#allocation11 + $0x120] sm:$0xff]
    %v631 = vld [vmem:[#allocation11 + $0x128] sm:$0xff]
    %v632 = vld [vmem:[#allocation11 + $0x130] sm:$0xff]
    %v633 = vld [vmem:[#allocation11 + $0x138] sm:$0xff]
    %v634 = vld [vmem:[#allocation11 + $0x140] sm:$0xff]
    %v635 = vld [vmem:[#allocation11 + $0x148] sm:$0xff]
    %v636 = vld [vmem:[#allocation11 + $0x150] sm:$0xff]
    %v637 = vld [vmem:[#allocation11 + $0x158] sm:$0xff]
    %v638 = vld [vmem:[#allocation11 + $0x160] sm:$0xff]
    %v639 = vld [vmem:[#allocation11 + $0x168] sm:$0xff]
    %v640 = vld [vmem:[#allocation11 + $0x170] sm:$0xff]
    %v641 = vld [vmem:[#allocation11 + $0x178] sm:$0xff]
    %v642 = vld [vmem:[#allocation11 + $0x180] sm:$0xff]
    %v643 = vld [vmem:[#allocation11 + $0x188] sm:$0xff]
    %v644 = vld [vmem:[#allocation11 + $0x190] sm:$0xff]
    %v645 = vld [vmem:[#allocation11 + $0x198] sm:$0xff]
    %v646 = vld [vmem:[#allocation11 + $0x1a0] sm:$0xff]
    %v647 = vld [vmem:[#allocation11 + $0x1a8] sm:$0xff]
    %v648 = vld [vmem:[#allocation11 + $0x1b0] sm:$0xff]
    %v649 = vld [vmem:[#allocation11 + $0x1b8] sm:$0xff]
    %v650 = vld [vmem:[#allocation11 + $0x1c0] sm:$0xff]
    %v651 = vld [vmem:[#allocation11 + $0x1c8] sm:$0xff]
    %v652 = vld [vmem:[#allocation11 + $0x1d0] sm:$0xff]
    %v653 = vld [vmem:[#allocation11 + $0x1d8] sm:$0xff]
    %v654 = vld [vmem:[#allocation11 + $0x1e0] sm:$0xff]
    %v655 = vld [vmem:[#allocation11 + $0x1e8] sm:$0xff]
    %v656 = vld [vmem:[#allocation11 + $0x1f0] sm:$0xff]
    %v657 = vld [vmem:[#allocation11 + $0x1f8] sm:$0xff]
    %v658 = vld [vmem:[#allocation11 + $0x200] sm:$0xff]
    %v659 = vld [vmem:[#allocation11 + $0x208] sm:$0xff]
    %v660 = vld [vmem:[#allocation11 + $0x210] sm:$0xff]
    %v661 = vld [vmem:[#allocation11 + $0x218] sm:$0xff]
    %v662 = vld [vmem:[#allocation11 + $0x220] sm:$0xff]
    %v663 = vld [vmem:[#allocation11 + $0x228] sm:$0xff]
    %v664 = vld [vmem:[#allocation11 + $0x230] sm:$0xff]
    %v665 = vld [vmem:[#allocation11 + $0x238] sm:$0xff]
    %v666 = vld [vmem:[#allocation11 + $0x240] sm:$0xff]
    %v667 = vld [vmem:[#allocation11 + $0x248] sm:$0xff]
    %v668 = vld [vmem:[#allocation11 + $0x250] sm:$0xff]
    %v669 = vld [vmem:[#allocation11 + $0x258] sm:$0xff]
    %v670 = vld [vmem:[#allocation11 + $0x260] sm:$0xff]
    %v671 = vld [vmem:[#allocation11 + $0x268] sm:$0xff]
    %v672 = vld [vmem:[#allocation11 + $0x270] sm:$0xff]
    %v673 = vld [vmem:[#allocation11 + $0x278] sm:$0xff]
    %v674 = vld [vmem:[#allocation11 + $0x280] sm:$0xff]
    %v675 = vld [vmem:[#allocation11 + $0x288] sm:$0xff]
    %v676 = vld [vmem:[#allocation11 + $0x290] sm:$0xff]
    %v677 = vld [vmem:[#allocation11 + $0x298] sm:$0xff]
    %v678 = vld [vmem:[#allocation11 + $0x2a0] sm:$0xff]
    %v679 = vld [vmem:[#allocation11 + $0x2a8] sm:$0xff]
    %v680 = vld [vmem:[#allocation11 + $0x2b0] sm:$0xff]
    %v681 = vld [vmem:[#allocation11 + $0x2b8] sm:$0xff]
    %v682 = vld [vmem:[#allocation11 + $0x2c0] sm:$0xff]
    %v683 = vld [vmem:[#allocation11 + $0x2c8] sm:$0xff]
    %v684 = vld [vmem:[#allocation11 + $0x2d0] sm:$0xff]
    %v685 = vld [vmem:[#allocation11 + $0x2d8] sm:$0xff]
    %v686 = vld [vmem:[#allocation11 + $0x2e0] sm:$0xff]
    %v687 = vld [vmem:[#allocation11 + $0x2e8] sm:$0xff]
    %v688 = vld [vmem:[#allocation11 + $0x2f0] sm:$0xff]
    %v689 = vld [vmem:[#allocation11 + $0x2f8] sm:$0xff]
    %v690 = vld [vmem:[#allocation11 + $0x300] sm:$0xff]
    %v691 = vld [vmem:[#allocation11 + $0x308] sm:$0xff]
    %v692 = vld [vmem:[#allocation11 + $0x310] sm:$0xff]
    %v693 = vld [vmem:[#allocation11 + $0x318] sm:$0xff]
    %v694 = vld [vmem:[#allocation11 + $0x320] sm:$0xff]
    %v695 = vld [vmem:[#allocation11 + $0x328] sm:$0xff]
    %v696 = vld [vmem:[#allocation11 + $0x330] sm:$0xff]
    %v697 = vld [vmem:[#allocation11 + $0x338] sm:$0xff]
    %v698 = vld [vmem:[#allocation11 + $0x340] sm:$0xff]
    %v699 = vld [vmem:[#allocation11 + $0x348] sm:$0xff]
    %v700 = vld [vmem:[#allocation11 + $0x350] sm:$0xff]
    %v701 = vld [vmem:[#allocation11 + $0x358] sm:$0xff]
    %v702 = vld [vmem:[#allocation11 + $0x360] sm:$0xff]
    %v703 = vld [vmem:[#allocation11 + $0x368] sm:$0xff]
    %v704 = vld [vmem:[#allocation11 + $0x370] sm:$0xff]
    %v705 = vld [vmem:[#allocation11 + $0x378] sm:$0xff]
    %v706 = vld [vmem:[#allocation11 + $0x380] sm:$0xff]
    %v707 = vld [vmem:[#allocation11 + $0x388] sm:$0xff]
    %v708 = vld [vmem:[#allocation11 + $0x390] sm:$0xff]
    %v709 = vld [vmem:[#allocation11 + $0x398] sm:$0xff]
    %v710 = vld [vmem:[#allocation11 + $0x3a0] sm:$0xff]
    %v711 = vld [vmem:[#allocation11 + $0x3a8] sm:$0xff]
    %v712 = vld [vmem:[#allocation11 + $0x3b0] sm:$0xff]
    %v713 = vld [vmem:[#allocation11 + $0x3b8] sm:$0xff]
    %v714 = vld [vmem:[#allocation11 + $0x3c0] sm:$0xff]
    %v715 = vld [vmem:[#allocation11 + $0x3c8] sm:$0xff]
    %v716 = vld [vmem:[#allocation11 + $0x3d0] sm:$0xff]
    %v717 = vld [vmem:[#allocation11 + $0x3d8] sm:$0xff]
    %v718 = vld [vmem:[#allocation11 + $0x3e0] sm:$0xff]
    %v719 = vld [vmem:[#allocation11 + $0x3e8] sm:$0xff]
    %v720 = vld [vmem:[#allocation11 + $0x3f0] sm:$0xff]
    %v721 = vld [vmem:[#allocation11 + $0x3f8] sm:$0xff]
    %v722 = vld [vmem:[%s6] sm:$0xf]
    %v724 = vperm.slane %v722, 0
    %v725 = vperm.slane %v722, 1
    %v726 = vperm.slane %v722, 2
    %v727 = vperm.slane %v722, 3
    %732 = vmatpush.msra.mxu0 %v654
    %733 = vmatpush.msra.mxu0 %v650
    %734 = vmatpush.msra.mxu0 %v646
    %735 = vmatpush.msra.mxu0 %v642
    %736 = vmatpush.msra.mxu0 %v638
    %737 = vmatpush.msra.mxu0 %v634
    %738 = vmatpush.msra.mxu0 %v630
    %739 = vmatpush.msra.mxu0 %v626
    %740 = vmatpush.msra.mxu0 %v622
    %741 = vmatpush.msra.mxu0 %v618
    %742 = vmatpush.msra.mxu0 %v614
    %743 = vmatpush.msra.mxu0 %v610
    %744 = vmatpush.msra.mxu0 %v606
    %745 = vmatpush.msra.mxu0 %v602
    %746 = vmatpush.msra.mxu0 %v598
    %747 = vmatpush.msra.mxu0 %v594
    %748 = vmatmul.f32.gmra.mxu0 %v592
    %v749 = vpop.f32.mrf.mxu0
    %v750 = vadd.f32 %v724, %v749
    %751 = vdwg.mxu0
    %752 = vmatpush.msra.mxu0 %v718
    %753 = vmatpush.msra.mxu0 %v714
    %754 = vmatpush.msra.mxu0 %v710
    %755 = vmatpush.msra.mxu0 %v706
    %756 = vmatpush.msra.mxu0 %v702
    %757 = vmatpush.msra.mxu0 %v698
    %758 = vmatpush.msra.mxu0 %v694
    %759 = vmatpush.msra.mxu0 %v690
    %760 = vmatpush.msra.mxu0 %v686
    %761 = vmatpush.msra.mxu0 %v682
    %762 = vmatpush.msra.mxu0 %v678
    %763 = vmatpush.msra.mxu0 %v674
    %764 = vmatpush.msra.mxu0 %v670
    %765 = vmatpush.msra.mxu0 %v666
    %766 = vmatpush.msra.mxu0 %v662
    %767 = vmatpush.msra.mxu0 %v658
    %768 = vmatmul.f32.gmra.mxu0 %v593
    %v769 = vpop.f32.mrf.mxu0
    %v770 = vadd.f32 %v750, %v769
    %771 = vdwg.mxu0
    %772 = vmatpush.msra.mxu0 %v655
    %773 = vmatpush.msra.mxu0 %v651
    %774 = vmatpush.msra.mxu0 %v647
    %775 = vmatpush.msra.mxu0 %v643
    %776 = vmatpush.msra.mxu0 %v639
    %777 = vmatpush.msra.mxu0 %v635
    %778 = vmatpush.msra.mxu0 %v631
    %779 = vmatpush.msra.mxu0 %v627
    %780 = vmatpush.msra.mxu0 %v623
    %781 = vmatpush.msra.mxu0 %v619
    %782 = vmatpush.msra.mxu0 %v615
    %783 = vmatpush.msra.mxu0 %v611
    %784 = vmatpush.msra.mxu0 %v607
    %785 = vmatpush.msra.mxu0 %v603
    %786 = vmatpush.msra.mxu0 %v599
    %787 = vmatpush.msra.mxu0 %v595
    %788 = vmatmul.f32.gmra.mxu0 %v592
    %v789 = vpop.f32.mrf.mxu0
    %v790 = vadd.f32 %v725, %v789
    %791 = vdwg.mxu0
    %792 = vmatpush.msra.mxu0 %v719
    %793 = vmatpush.msra.mxu0 %v715
    %794 = vmatpush.msra.mxu0 %v711
    %795 = vmatpush.msra.mxu0 %v707
    %796 = vmatpush.msra.mxu0 %v703
    %797 = vmatpush.msra.mxu0 %v699
    %798 = vmatpush.msra.mxu0 %v695
    %799 = vmatpush.msra.mxu0 %v691
    %800 = vmatpush.msra.mxu0 %v687
    %801 = vmatpush.msra.mxu0 %v683
    %802 = vmatpush.msra.mxu0 %v679
    %803 = vmatpush.msra.mxu0 %v675
    %804 = vmatpush.msra.mxu0 %v671
    %805 = vmatpush.msra.mxu0 %v667
    %806 = vmatpush.msra.mxu0 %v663
    %807 = vmatpush.msra.mxu0 %v659
    %808 = vmatmul.f32.gmra.mxu0 %v593
    %v809 = vpop.f32.mrf.mxu0
    %v810 = vadd.f32 %v790, %v809
    %811 = vdwg.mxu0
    %812 = vmatpush.msra.mxu0 %v656
    %813 = vmatpush.msra.mxu0 %v652
    %814 = vmatpush.msra.mxu0 %v648
    %815 = vmatpush.msra.mxu0 %v644
    %816 = vmatpush.msra.mxu0 %v640
    %817 = vmatpush.msra.mxu0 %v636
    %818 = vmatpush.msra.mxu0 %v632
    %819 = vmatpush.msra.mxu0 %v628
    %820 = vmatpush.msra.mxu0 %v624
    %821 = vmatpush.msra.mxu0 %v620
    %822 = vmatpush.msra.mxu0 %v616
    %823 = vmatpush.msra.mxu0 %v612
    %824 = vmatpush.msra.mxu0 %v608
    %825 = vmatpush.msra.mxu0 %v604
    %826 = vmatpush.msra.mxu0 %v600
    %827 = vmatpush.msra.mxu0 %v596
    %828 = vmatmul.f32.gmra.mxu0 %v592
    %v829 = vpop.f32.mrf.mxu0
    %v830 = vadd.f32 %v726, %v829
    %831 = vdwg.mxu0
    %832 = vmatpush.msra.mxu0 %v720
    %833 = vmatpush.msra.mxu0 %v716
    %834 = vmatpush.msra.mxu0 %v712
    %835 = vmatpush.msra.mxu0 %v708
    %836 = vmatpush.msra.mxu0 %v704
    %837 = vmatpush.msra.mxu0 %v700
    %838 = vmatpush.msra.mxu0 %v696
    %839 = vmatpush.msra.mxu0 %v692
    %840 = vmatpush.msra.mxu0 %v688
    %841 = vmatpush.msra.mxu0 %v684
    %842 = vmatpush.msra.mxu0 %v680
    %843 = vmatpush.msra.mxu0 %v676
    %844 = vmatpush.msra.mxu0 %v672
    %845 = vmatpush.msra.mxu0 %v668
    %846 = vmatpush.msra.mxu0 %v664
    %847 = vmatpush.msra.mxu0 %v660
    %848 = vmatmul.f32.gmra.mxu0 %v593
    %v849 = vpop.f32.mrf.mxu0
    %v850 = vadd.f32 %v830, %v849
    %851 = vdwg.mxu0
    %852 = vmatpush.msra.mxu0 %v657
    %853 = vmatpush.msra.mxu0 %v653
    %854 = vmatpush.msra.mxu0 %v649
    %855 = vmatpush.msra.mxu0 %v645
    %856 = vmatpush.msra.mxu0 %v641
    %857 = vmatpush.msra.mxu0 %v637
    %858 = vmatpush.msra.mxu0 %v633
    %859 = vmatpush.msra.mxu0 %v629
    %860 = vmatpush.msra.mxu0 %v625
    %861 = vmatpush.msra.mxu0 %v621
    %862 = vmatpush.msra.mxu0 %v617
    %863 = vmatpush.msra.mxu0 %v613
    %864 = vmatpush.msra.mxu0 %v609
    %865 = vmatpush.msra.mxu0 %v605
    %866 = vmatpush.msra.mxu0 %v601
    %867 = vmatpush.msra.mxu0 %v597
    %868 = vmatmul.f32.gmra.mxu0 %v592
    %v869 = vpop.f32.mrf.mxu0
    %v870 = vadd.f32 %v727, %v869
    %871 = vdwg.mxu0
    %872 = vmatpush.msra.mxu0 %v721
    %873 = vmatpush.msra.mxu0 %v717
    %874 = vmatpush.msra.mxu0 %v713
    %875 = vmatpush.msra.mxu0 %v709
    %876 = vmatpush.msra.mxu0 %v705
    %877 = vmatpush.msra.mxu0 %v701
    %878 = vmatpush.msra.mxu0 %v697
    %879 = vmatpush.msra.mxu0 %v693
    %880 = vmatpush.msra.mxu0 %v689
    %881 = vmatpush.msra.mxu0 %v685
    %882 = vmatpush.msra.mxu0 %v681
    %883 = vmatpush.msra.mxu0 %v677
    %884 = vmatpush.msra.mxu0 %v673
    %885 = vmatpush.msra.mxu0 %v669
    %886 = vmatpush.msra.mxu0 %v665
    %887 = vmatpush.msra.mxu0 %v661
    %888 = vmatmul.f32.gmra.mxu0 %v593
    %v889 = vpop.f32.mrf.mxu0
    %v890 = vadd.f32 %v870, %v889
    %891 = vdwg.mxu0
    %v892 = vtanh.pop %v770
    %v893 = vtanh.pop %v810
    %v894 = vtanh.pop %v850
    %v895 = vtanh.pop %v890
    %v896 = vld [vmem:[#allocation13] sm:$0xff]
    %v897 = vld [vmem:[#allocation13 + $0x8] sm:$0xff]
    %v898 = vld [vmem:[#allocation13 + $0x10] sm:$0xff]
    %v899 = vld [vmem:[#allocation13 + $0x18] sm:$0xff]
    %v900 = vld [vmem:[#allocation13 + $0x20] sm:$0xff]
    %v901 = vld [vmem:[#allocation13 + $0x28] sm:$0xff]
    %v902 = vld [vmem:[#allocation13 + $0x30] sm:$0xff]
    %v903 = vld [vmem:[#allocation13 + $0x38] sm:$0xff]
    %v904 = vld [vmem:[#allocation13 + $0x40] sm:$0xff]
    %v905 = vld [vmem:[#allocation13 + $0x48] sm:$0xff]
    %v906 = vld [vmem:[#allocation13 + $0x50] sm:$0xff]
    %v907 = vld [vmem:[#allocation13 + $0x58] sm:$0xff]
    %v908 = vld [vmem:[#allocation13 + $0x60] sm:$0xff]
    %v909 = vld [vmem:[#allocation13 + $0x68] sm:$0xff]
    %v910 = vld [vmem:[#allocation13 + $0x70] sm:$0xff]
    %v911 = vld [vmem:[#allocation13 + $0x78] sm:$0xff]
    %v912 = vld [vmem:[#allocation13 + $0x80] sm:$0xff]
    %v913 = vld [vmem:[#allocation13 + $0x88] sm:$0xff]
    %v914 = vld [vmem:[#allocation13 + $0x90] sm:$0xff]
    %v915 = vld [vmem:[#allocation13 + $0x98] sm:$0xff]
    %v916 = vld [vmem:[#allocation13 + $0xa0] sm:$0xff]
    %v917 = vld [vmem:[#allocation13 + $0xa8] sm:$0xff]
    %v918 = vld [vmem:[#allocation13 + $0xb0] sm:$0xff]
    %v919 = vld [vmem:[#allocation13 + $0xb8] sm:$0xff]
    %v920 = vld [vmem:[#allocation13 + $0xc0] sm:$0xff]
    %v921 = vld [vmem:[#allocation13 + $0xc8] sm:$0xff]
    %v922 = vld [vmem:[#allocation13 + $0xd0] sm:$0xff]
    %v923 = vld [vmem:[#allocation13 + $0xd8] sm:$0xff]
    %v924 = vld [vmem:[#allocation13 + $0xe0] sm:$0xff]
    %v925 = vld [vmem:[#allocation13 + $0xe8] sm:$0xff]
    %v926 = vld [vmem:[#allocation13 + $0xf0] sm:$0xff]
    %v927 = vld [vmem:[#allocation13 + $0xf8] sm:$0xff]
    %v928 = vld [vmem:[#allocation13 + $0x100] sm:$0xff]
    %v929 = vld [vmem:[#allocation13 + $0x108] sm:$0xff]
    %v930 = vld [vmem:[#allocation13 + $0x110] sm:$0xff]
    %v931 = vld [vmem:[#allocation13 + $0x118] sm:$0xff]
    %v932 = vld [vmem:[#allocation13 + $0x120] sm:$0xff]
    %v933 = vld [vmem:[#allocation13 + $0x128] sm:$0xff]
    %v934 = vld [vmem:[#allocation13 + $0x130] sm:$0xff]
    %v935 = vld [vmem:[#allocation13 + $0x138] sm:$0xff]
    %v936 = vld [vmem:[#allocation13 + $0x140] sm:$0xff]
    %v937 = vld [vmem:[#allocation13 + $0x148] sm:$0xff]
    %v938 = vld [vmem:[#allocation13 + $0x150] sm:$0xff]
    %v939 = vld [vmem:[#allocation13 + $0x158] sm:$0xff]
    %v940 = vld [vmem:[#allocation13 + $0x160] sm:$0xff]
    %v941 = vld [vmem:[#allocation13 + $0x168] sm:$0xff]
    %v942 = vld [vmem:[#allocation13 + $0x170] sm:$0xff]
    %v943 = vld [vmem:[#allocation13 + $0x178] sm:$0xff]
    %v944 = vld [vmem:[#allocation13 + $0x180] sm:$0xff]
    %v945 = vld [vmem:[#allocation13 + $0x188] sm:$0xff]
    %v946 = vld [vmem:[#allocation13 + $0x190] sm:$0xff]
    %v947 = vld [vmem:[#allocation13 + $0x198] sm:$0xff]
    %v948 = vld [vmem:[#allocation13 + $0x1a0] sm:$0xff]
    %v949 = vld [vmem:[#allocation13 + $0x1a8] sm:$0xff]
    %v950 = vld [vmem:[#allocation13 + $0x1b0] sm:$0xff]
    %v951 = vld [vmem:[#allocation13 + $0x1b8] sm:$0xff]
    %v952 = vld [vmem:[#allocation13 + $0x1c0] sm:$0xff]
    %v953 = vld [vmem:[#allocation13 + $0x1c8] sm:$0xff]
    %v954 = vld [vmem:[#allocation13 + $0x1d0] sm:$0xff]
    %v955 = vld [vmem:[#allocation13 + $0x1d8] sm:$0xff]
    %v956 = vld [vmem:[#allocation13 + $0x1e0] sm:$0xff]
    %v957 = vld [vmem:[#allocation13 + $0x1e8] sm:$0xff]
    %v958 = vld [vmem:[#allocation13 + $0x1f0] sm:$0xff]
    %v959 = vld [vmem:[#allocation13 + $0x1f8] sm:$0xff]
    %v960 = vld [vmem:[%s8] sm:$0x1]
    %v962 = vperm.slane %v960, 0
    %964 = vmatpush.msra.mxu0 %v911
    %965 = vmatpush.msra.mxu0 %v910
    %966 = vmatpush.msra.mxu0 %v909
    %967 = vmatpush.msra.mxu0 %v908
    %968 = vmatpush.msra.mxu0 %v907
    %969 = vmatpush.msra.mxu0 %v906
    %970 = vmatpush.msra.mxu0 %v905
    %971 = vmatpush.msra.mxu0 %v904
    %972 = vmatpush.msra.mxu0 %v903
    %973 = vmatpush.msra.mxu0 %v902
    %974 = vmatpush.msra.mxu0 %v901
    %975 = vmatpush.msra.mxu0 %v900
    %976 = vmatpush.msra.mxu0 %v899
    %977 = vmatpush.msra.mxu0 %v898
    %978 = vmatpush.msra.mxu0 %v897
    %979 = vmatpush.msra.mxu0 %v896
    %980 = vmatmul.f32.gmra.mxu0 %v892
    %v981 = vpop.f32.mrf.mxu0
    %v982 = vadd.f32 %v962, %v981
    %983 = vdwg.mxu0
    %984 = vmatpush.msra.mxu0 %v927
    %985 = vmatpush.msra.mxu0 %v926
    %986 = vmatpush.msra.mxu0 %v925
    %987 = vmatpush.msra.mxu0 %v924
    %988 = vmatpush.msra.mxu0 %v923
    %989 = vmatpush.msra.mxu0 %v922
    %990 = vmatpush.msra.mxu0 %v921
    %991 = vmatpush.msra.mxu0 %v920
    %992 = vmatpush.msra.mxu0 %v919
    %993 = vmatpush.msra.mxu0 %v918
    %994 = vmatpush.msra.mxu0 %v917
    %995 = vmatpush.msra.mxu0 %v916
    %996 = vmatpush.msra.mxu0 %v915
    %997 = vmatpush.msra.mxu0 %v914
    %998 = vmatpush.msra.mxu0 %v913
    %999 = vmatpush.msra.mxu0 %v912
    %1000 = vmatmul.f32.gmra.mxu0 %v893
    %v1001 = vpop.f32.mrf.mxu0
    %v1002 = vadd.f32 %v982, %v1001
    %1003 = vdwg.mxu0
    %1004 = vmatpush.msra.mxu0 %v943
    %1005 = vmatpush.msra.mxu0 %v942
    %1006 = vmatpush.msra.mxu0 %v941
    %1007 = vmatpush.msra.mxu0 %v940
    %1008 = vmatpush.msra.mxu0 %v939
    %1009 = vmatpush.msra.mxu0 %v938
    %1010 = vmatpush.msra.mxu0 %v937
    %1011 = vmatpush.msra.mxu0 %v936
    %1012 = vmatpush.msra.mxu0 %v935
    %1013 = vmatpush.msra.mxu0 %v934
    %1014 = vmatpush.msra.mxu0 %v933
    %1015 = vmatpush.msra.mxu0 %v932
    %1016 = vmatpush.msra.mxu0 %v931
    %1017 = vmatpush.msra.mxu0 %v930
    %1018 = vmatpush.msra.mxu0 %v929
    %1019 = vmatpush.msra.mxu0 %v928
    %1020 = vmatmul.f32.gmra.mxu0 %v894
    %v1021 = vpop.f32.mrf.mxu0
    %v1022 = vadd.f32 %v1002, %v1021
    %1023 = vdwg.mxu0
    %1024 = vmatpush.msra.mxu0 %v959
    %1025 = vmatpush.msra.mxu0 %v958
    %1026 = vmatpush.msra.mxu0 %v957
    %1027 = vmatpush.msra.mxu0 %v956
    %1028 = vmatpush.msra.mxu0 %v955
    %1029 = vmatpush.msra.mxu0 %v954
    %1030 = vmatpush.msra.mxu0 %v953
    %1031 = vmatpush.msra.mxu0 %v952
    %1032 = vmatpush.msra.mxu0 %v951
    %1033 = vmatpush.msra.mxu0 %v950
    %1034 = vmatpush.msra.mxu0 %v949
    %1035 = vmatpush.msra.mxu0 %v948
    %1036 = vmatpush.msra.mxu0 %v947
    %1037 = vmatpush.msra.mxu0 %v946
    %1038 = vmatpush.msra.mxu0 %v945
    %1039 = vmatpush.msra.mxu0 %v944
    %1040 = vmatmul.f32.gmra.mxu0 %v895
    %v1041 = vpop.f32.mrf.mxu0
    %v1042 = vadd.f32 %v1022, %v1041
    %1043 = vdwg.mxu0
    %v1044 = vtanh.pop %v1042
    %1045 = vst [vmem:[#allocation14] sm:$0xff] %v1044
    %1046 = vst [vmem:[#allocation15] sm:$0xff] %v592
    %1047 = vst [vmem:[#allocation15 + $0x8] sm:$0xff] %v593
    // Predicated region
    $region66: #{tpu_custom_call.1} parent=1 // pred_check
      _
    $region67: #{tpu_custom_call.1} parent=1 // pred_check_branch
      %1049 = sbr.rel (0) target = $region69
    $region68: #{tpu_custom_call.1} parent=1 // pred_region
      %1051 = vsyncadd [#allocation4], 0
      %s1053 = sshll.u32 [#allocation14], 4
      %s1054 = int_to_ptr.vmem [resolvable:$true] %s1053
      %s1055 = sshll.u32 %s9, 4
      %s1056 = int_to_ptr.hbm [resolvable:$true] %s1055
      %1058 = dma.vmem_to_hbm [thread:$0]  %s1054, 128, %s1056, [#allocation4]
    $region69: #{tpu_custom_call.1} parent=1 // pred_fallthru
      _
    // Predicated region
    $region70: #{tpu_custom_call.1} parent=1 // pred_check
      _
    $region71: #{tpu_custom_call.1} parent=1 // pred_check_branch
      %1060 = sbr.rel (0) target = $region73
    $region72: #{tpu_custom_call.1} parent=1 // pred_region
      %1062 = vsyncadd [#allocation16], 0
      %s1064 = sshll.u32 [#allocation15], 4
      %s1065 = int_to_ptr.vmem [resolvable:$true] %s1064
      %s1066 = sshll.u32 %s10, 4
      %s1067 = int_to_ptr.hbm [resolvable:$true] %s1066
      %1069 = dma.vmem_to_hbm [thread:$0]  %s1065, 256, %s1067, [#allocation16]
    $region73: #{tpu_custom_call.1} parent=1 // pred_fallthru
      _
    // Predicated region
    $region74: #{tpu_custom_call.1} parent=1 // pred_check
      _
    $region75: #{tpu_custom_call.1} parent=1 // pred_check_branch
      %1071 = sbr.rel (0) target = $region77
    $region76: #{tpu_custom_call.1} parent=1 // pred_region
      %1073 = dma.done [#allocation4], 128
    $region77: #{tpu_custom_call.1} parent=1 // pred_fallthru
      _
    // Predicated region
    $region78: #{tpu_custom_call.1} parent=1 // pred_check
      _
    $region79: #{tpu_custom_call.1} parent=1 // pred_check_branch
      %1075 = sbr.rel (0) target = $region81
    $region80: #{tpu_custom_call.1} parent=1 // pred_region
      %1077 = dma.done [#allocation16], 256
    $region81: #{tpu_custom_call.1} parent=1 // pred_fallthru
      _
    %1078 = vsyncpa [#allocation3], 1
    %1079 = vsyncpa [#allocation6], 1
    %1080 = vsyncpa [#allocation9], 1
    %1081 = vsyncpa [#allocation12], 1
    %1082 = vsyncpa [#allocation4], 1
    %1083 = vsyncpa [#allocation16], 1

</llo_original>
